<compile_context>
chip_gen: v7x
topology: tpu7x:2x2x1
jax: 0.10.0
libtpu: 0.0.40
codegen_flags: <defaults>
</compile_context>

<pallas_src>
import jax
import jax.numpy as jnp
from jax.experimental import pallas as pl
from jax.experimental.pallas import tpu as pltpu

LANES = 128  # fast (lane) axis width of a TPU vreg


def feature_kernel(x1_ref, x2_ref, o_ref):
    # x1_ref / x2_ref / o_ref: (block_rows, 128) lane-dense VMEM tiles.
    x1 = x1_ref[...]
    x2 = x2_ref[...]
    # elementwise hot path: (1 - x1^2) * (1 - x2^2)
    o_ref[...] = (1.0 - x1 * x1) * (1.0 - x2 * x2)


def my_feature(x, *, tile_rows=1024):
    """x: [N, D] float array with columns ['x1', 'x2', ...] (D >= 2).

    Returns [N, 1] = (1 - x1^2) * (1 - x2^2)  (the 'k0' feature column).
    """
    N, D = x.shape
    assert D >= 2, "expected at least the ['x1', 'x2'] columns"

    # Extract the labeled columns (column order convention documented above).
    x1 = x[:, 0]
    x2 = x[:, 1]

    # --- repack to lane-dense [rows, 128] slabs -----------------------------
    rows = pl.cdiv(N, LANES)                      # rows needed to hold N elems
    if rows >= tile_rows:
        block_rows = tile_rows
        rows_pad = pl.cdiv(rows, tile_rows) * tile_rows
    else:
        # Small input: a single block, rows padded up to a sublane multiple.
        rows_pad = max(8, pl.cdiv(rows, 8) * 8)
        block_rows = rows_pad
    total = rows_pad * LANES

    def repack(v):
        v = jnp.pad(v, (0, total - N))
        return v.reshape(rows_pad, LANES)

    x1p = repack(x1)
    x2p = repack(x2)

    grid = (rows_pad // block_rows,)

    out = pl.pallas_call(
        feature_kernel,
        out_shape=jax.ShapeDtypeStruct((rows_pad, LANES), x.dtype),
        grid=grid,
        in_specs=[
            pl.BlockSpec((block_rows, LANES), lambda i: (i, 0)),
            pl.BlockSpec((block_rows, LANES), lambda i: (i, 0)),
        ],
        out_specs=pl.BlockSpec((block_rows, LANES), lambda i: (i, 0)),
        compiler_params=pltpu.CompilerParams(
            dimension_semantics=("parallel",)),
    )(x1p, x2p)

    # Undo the lane-dense repacking: flat, drop padding, present as [N, 1] 'k0'.
    return out.reshape(-1)[:N].reshape(N, 1)


if __name__ == "__main__":
    # Small deterministic example: N=200 collocation points (deliberately NOT
    # a multiple of 128 to exercise the padding path), D=3 columns
    # ['x1', 'x2', 'mu'].
    N, D = 200, 3
    key = jax.random.PRNGKey(0)
    x = jax.random.uniform(key, (N, D), dtype=jnp.float32,
                           minval=-1.0, maxval=1.0)

    out = my_feature(x)
    jax.block_until_ready(out)

    # pure-JAX reference
    ref = (1.0 - x[:, 0:1] ** 2) * (1.0 - x[:, 1:2] ** 2)
    assert out.shape == (N, 1)
    assert jnp.allclose(out, ref, atol=1e-6, rtol=1e-6)

    print("KERNEL_OK")
</pallas_src>

<mosaic_0001>
module attributes {stable_mosaic.version = 11 : i64} {
  func.func @feature_kernel(%arg0: i32, %arg1: memref<8x128xf32, #tpu.memory_space<vmem>>, %arg2: memref<8x128xf32, #tpu.memory_space<vmem>>, %arg3: memref<8x128xf32, #tpu.memory_space<vmem>>) attributes {dimension_semantics = [#tpu.dimension_semantics<parallel>], iteration_bounds = array<i64: 1>, scalar_prefetch = 0 : i64, scratch_operands = 0 : i64, tpu.core_type = #tpu.core_type<tc>, window_params = [{transform_indices = @transform_0, window_bounds = array<i64: 8, 128>}, {transform_indices = @transform_1, window_bounds = array<i64: 8, 128>}, {transform_indices = @transform_2, window_bounds = array<i64: 8, 128>}]} {
    %c0 = arith.constant 0 : index
    %c0_0 = arith.constant 0 : index
    %0 = vector.load %arg1[%c0, %c0_0] : memref<8x128xf32, #tpu.memory_space<vmem>>, vector<8x128xf32>
    %c0_1 = arith.constant 0 : index
    %c0_2 = arith.constant 0 : index
    %1 = vector.load %arg2[%c0_1, %c0_2] : memref<8x128xf32, #tpu.memory_space<vmem>>, vector<8x128xf32>
    %2 = arith.mulf %0, %0 : vector<8x128xf32>
    %cst = arith.constant 1.000000e+00 : f32
    %3 = vector.broadcast %cst : f32 to vector<8x128xf32>
    %4 = arith.subf %3, %2 : vector<8x128xf32>
    %5 = arith.mulf %1, %1 : vector<8x128xf32>
    %cst_3 = arith.constant 1.000000e+00 : f32
    %6 = vector.broadcast %cst_3 : f32 to vector<8x128xf32>
    %7 = arith.subf %6, %5 : vector<8x128xf32>
    %8 = arith.mulf %4, %7 : vector<8x128xf32>
    %c0_4 = arith.constant 0 : index
    %c0_5 = arith.constant 0 : index
    %9 = vector.load %arg3[%c0_4, %c0_5] : memref<8x128xf32, #tpu.memory_space<vmem>>, vector<8x128xf32>
    tpu.vector_store %arg3[%c0_4, %c0_5], %8 {strides = array<i32>} : memref<8x128xf32, #tpu.memory_space<vmem>>, vector<8x128xf32>,
    return
  }
  func.func @transform_0(%arg0: i32) -> (i32, i32) {
    %c0_i32 = arith.constant 0 : i32
    %c0_i32_0 = arith.constant 0 : i32
    return %arg0, %c0_i32 : i32, i32
  }
  func.func @transform_1(%arg0: i32) -> (i32, i32) {
    %c0_i32 = arith.constant 0 : i32
    %c0_i32_0 = arith.constant 0 : i32
    return %arg0, %c0_i32 : i32, i32
  }
  func.func @transform_2(%arg0: i32) -> (i32, i32) {
    %c0_i32 = arith.constant 0 : i32
    %c0_i32_0 = arith.constant 0 : i32
    return %arg0, %c0_i32 : i32, i32
  }
}

</mosaic_0001>

<llo_original>
// kernel: tpu_custom_call.1
$region0: #{tpu_custom_call.1}
  #allocation0 [shape = 'u32[]', space=smem, size = 0x4, offset = 0x4, fixed_abs, tag = 'smem constant byte address 0x4 - core index']
  #allocation1 [shape = 'u32[144,128]{1,0:T(1,128)}', space=vmem, size = 0x12000, scoped, tag = 'internal scratch']
  %s0 = inlined_call_operand.hbm [shape: f32[8,128], index: 0, kind: input, shape index: {}]
  %s1 = inlined_call_operand.hbm [shape: f32[8,128], index: 1, kind: input, shape index: {}]
  %s2 = inlined_call_operand.hbm [shape: f32[8,128], index: 2, kind: output, shape index: {}]
  %s3 = sld [smem:[#allocation0]]
  $region26: #{tpu_custom_call.1} parent=0
    _
  %s5 = ssub.s32 1, %s3
  %s6 = scalar_select 0, %s5, %s3
  $region1: #{tpu_custom_call.1} parent=0
    #allocation2 [shape = 'u8[4096]{0}', space=vmem, size = 0x1000, scoped, tag = 'input window, operand 0, single buffered']
    #allocation3 [shape = 's32[1]{0}', space=sflag, size = 0x4, scoped, tag = 'scoped memory for tpu_custom_call.1']
    #allocation4 [shape = 's32[1]{0}', space=sflag, size = 0x4, scoped, tag = 'scoped memory for tpu_custom_call.1']
    #allocation5 [shape = 'u8[4096]{0}', space=vmem, size = 0x1000, scoped, tag = 'input window, operand 1, single buffered']
    #allocation6 [shape = 's32[1]{0}', space=sflag, size = 0x4, scoped, tag = 'scoped memory for tpu_custom_call.1']
    #allocation7 [shape = 'u8[4096]{0}', space=vmem, size = 0x1000, scoped, tag = 'output window, operand 0, single buffered']
    %7 = vsyncpa [#allocation3], 0
    %8 = vsyncpa [#allocation6], 0
    %9 = vsyncpa [#allocation4], 0
    // Predicated region
    $region2: #{tpu_custom_call.1} parent=1 // pred_check
      _
    $region3: #{tpu_custom_call.1} parent=1 // pred_check_branch
      %11 = sbr.rel (0) target = $region5
    $region4: #{tpu_custom_call.1} parent=1 // pred_region
      %s13 = ssub.s32 128, 128
      %14 = vsyncadd [#allocation3], %s13
      %s16 = sshll.u32 [#allocation2], 4
      %s17 = int_to_ptr.vmem [resolvable:$true] %s16
      %19 = dma.hbm_to_vmem [thread:$0]  %s0, 128, %s17, [#allocation3]
    $region5: #{tpu_custom_call.1} parent=1 // pred_fallthru
      _
    // Predicated region
    $region6: #{tpu_custom_call.1} parent=1 // pred_check
      _
    $region7: #{tpu_custom_call.1} parent=1 // pred_check_branch
      %21 = sbr.rel (0) target = $region9
    $region8: #{tpu_custom_call.1} parent=1 // pred_region
      %s23 = ssub.s32 128, 128
      %24 = vsyncadd [#allocation6], %s23
      %s26 = sshll.u32 [#allocation5], 4
      %s27 = int_to_ptr.vmem [resolvable:$true] %s26
      %29 = dma.hbm_to_vmem [thread:$0]  %s1, 128, %s27, [#allocation6]
    $region9: #{tpu_custom_call.1} parent=1 // pred_fallthru
      _
    // Predicated region
    $region10: #{tpu_custom_call.1} parent=1 // pred_check
      _
    $region11: #{tpu_custom_call.1} parent=1 // pred_check_branch
      %31 = sbr.rel (0) target = $region13
    $region12: #{tpu_custom_call.1} parent=1 // pred_region
      %32 = dma.done [#allocation3], 128
    $region13: #{tpu_custom_call.1} parent=1 // pred_fallthru
      _
    // Predicated region
    $region14: #{tpu_custom_call.1} parent=1 // pred_check
      _
    $region15: #{tpu_custom_call.1} parent=1 // pred_check_branch
      %34 = sbr.rel (0) target = $region17
    $region16: #{tpu_custom_call.1} parent=1 // pred_region
      %35 = dma.done [#allocation6], 128
    $region17: #{tpu_custom_call.1} parent=1 // pred_fallthru
      _
    %v36 = vld [vmem:[#allocation2] sm:$0xff]
    %v37 = vld [vmem:[#allocation5] sm:$0xff]
    %v38 = vmul.f32 %v36, %v36
    %v39 = vsub.f32 1.0, %v38
    %v40 = vmul.f32 %v37, %v37
    %v41 = vsub.f32 1.0, %v40
    %v42 = vmul.f32 %v39, %v41
    %43 = vst [vmem:[#allocation7] sm:$0xff] %v42
    // Predicated region
    $region18: #{tpu_custom_call.1} parent=1 // pred_check
      _
    $region19: #{tpu_custom_call.1} parent=1 // pred_check_branch
      %45 = sbr.rel (0) target = $region21
    $region20: #{tpu_custom_call.1} parent=1 // pred_region
      %s47 = ssub.s32 128, 128
      %48 = vsyncadd [#allocation4], %s47
      %s50 = sshll.u32 [#allocation7], 4
      %s51 = int_to_ptr.vmem [resolvable:$true] %s50
      %53 = dma.vmem_to_hbm [thread:$0]  %s51, 128, %s2, [#allocation4]
    $region21: #{tpu_custom_call.1} parent=1 // pred_fallthru
      _
    // Predicated region
    $region22: #{tpu_custom_call.1} parent=1 // pred_check
      _
    $region23: #{tpu_custom_call.1} parent=1 // pred_check_branch
      %55 = sbr.rel (0) target = $region25
    $region24: #{tpu_custom_call.1} parent=1 // pred_region
      %56 = dma.done [#allocation4], 128
    $region25: #{tpu_custom_call.1} parent=1 // pred_fallthru
      _
    %57 = vsyncpa [#allocation3], 1
    %58 = vsyncpa [#allocation6], 1
    %59 = vsyncpa [#allocation4], 1

</llo_original>
